<compile_context>
chip_gen: v7x
topology: tpu7x:2x2x1
jax: 0.10.0
libtpu: 0.0.40
codegen_flags: <defaults>
</compile_context>

<pallas_src>
import functools

import jax
import jax.numpy as jnp
from jax import lax
from jax.experimental import pallas as pl
from jax.experimental.pallas import tpu as pltpu

LANES = 128
SUBLANES = 8
TARGET_BLOCK_BYTES = 4 << 20     # ~4 MiB streamed per input per grid step
CHUNK_ROWS = 1024                # per-chunk f32 temporaries stay at 512 KiB


def _round_up(x, m):
    return (x + m - 1) // m * m


def _pinball_sum_jax(inp, tgt, aq, bq, use_max):
    """Tiny pure-JAX pinball-loss sum (used only for the <128-element tail)."""
    d = tgt.astype(jnp.float32) - inp.astype(jnp.float32)
    if use_max:
        loss = jnp.maximum(aq * d, (-bq) * d)
    else:
        loss = jnp.where(d >= 0.0, aq * d, bq * (-d))
    return jnp.sum(loss)


def _quantile_loss_kernel(inp_ref, tgt_ref, out_ref, *,
                          aq, bq, use_max, chunk_rows, need_mask,
                          valid_rows_last):
    s = pl.program_id(0)
    block_rows = inp_ref.shape[0]

    @pl.when(s == 0)
    def _():
        out_ref[...] = jnp.zeros_like(out_ref)

    def accumulate(masked):
        # Fold (block_rows, 128) -> (8, 128) with VPU adds only; process the
        # block in static sub-chunks (static slice offsets -> free ref views)
        # so f32 temporaries stay chunk-sized, not block-sized.
        acc = jnp.zeros((SUBLANES, LANES), jnp.float32)
        for c in range(0, block_rows, chunk_rows):
            rows_c = min(chunk_rows, block_rows - c)
            d = (tgt_ref[pl.ds(c, rows_c), :].astype(jnp.float32)
                 - inp_ref[pl.ds(c, rows_c), :].astype(jnp.float32))
            if masked:
                # Row-granular validity mask (only ever runs on the last step).
                row_idx = c + lax.broadcasted_iota(jnp.int32, (rows_c, LANES), 0)
                d = jnp.where(row_idx < valid_rows_last, d, 0.0)
            if use_max:
                # alpha, beta, q >= 0: where(d>=0, aq*d, bq*(-d)) == max(aq*d, -bq*d)
                loss = jnp.maximum(aq * d, (-bq) * d)
            else:
                loss = jnp.where(d >= 0.0, aq * d, bq * (-d))
            acc = acc + jnp.sum(
                loss.reshape(rows_c // SUBLANES, SUBLANES, LANES), axis=0)
        return acc

    if need_mask:
        is_last = s == pl.num_programs(0) - 1

        @pl.when(jnp.logical_not(is_last))
        def _():
            out_ref[...] += accumulate(False)     # hot path: no mask ops

        @pl.when(is_last)
        def _():
            out_ref[...] += accumulate(True)      # only the final step masks
    else:
        out_ref[...] += accumulate(False)


def _vmem_limit_bytes():
    # Generation-aware scoped-VMEM limit: v5e/v6e (128 MiB physical) -> 96 MiB,
    # v7x (64 MiB physical per TensorCore) -> 48 MiB.
    try:
        cap = int(pltpu.get_tpu_info().vmem_capacity_bytes)
    except Exception:
        cap = 64 << 20
    return min(cap * 3 // 4, 96 << 20)


def quantile_loss_pallas(inp, tgt, q=0.5, alpha=1.0, beta=1.0):
    assert 0.0 <= float(q) <= 1.0, "q (quantile) should be in [0, 1]"
    if inp.shape != tgt.shape:
        # TODO(synk): express broadcasting through the BlockSpec index_map
        # (stride-0 block reuse) instead of materializing a full HBM copy.
        inp, tgt = jnp.broadcast_arrays(inp, tgt)

    aq = float(alpha) * float(q)
    bq = float(beta) * (1.0 - float(q))
    use_max = (float(alpha) >= 0.0) and (float(beta) >= 0.0)

    out_dtype = jnp.promote_types(inp.dtype, tgt.dtype)
    if not jnp.issubdtype(out_dtype, jnp.floating):
        out_dtype = jnp.float32

    n = int(inp.size)
    if n == 0:
        # torch.mean of an empty tensor is NaN.
        return jnp.full((), jnp.nan, dtype=out_dtype)

    # Flatten in native dtype (free reshape; upcast to f32 happens in-kernel).
    flat_i = jnp.ravel(inp)
    flat_t = jnp.ravel(tgt)

    rows = n // LANES                 # full 128-lane rows streamed by the kernel
    lane_tail = n - rows * LANES      # < 128 leftover elements

    tail_sum = jnp.zeros((), jnp.float32)
    if lane_tail:
        tail_sum = _pinball_sum_jax(flat_i[rows * LANES:], flat_t[rows * LANES:],
                                    aq, bq, use_max)

    if rows == 0:
        total = tail_sum              # tiny input: no kernel needed
    else:
        if lane_tail:
            # TODO(synk): a 1-D-block (or manual-DMA) path would avoid this prefix
            # copy for the rare n % 128 != 0 case; the common case below is copy-free.
            main_i = flat_i[:rows * LANES].reshape(rows, LANES)
            main_t = flat_t[:rows * LANES].reshape(rows, LANES)
        else:
            main_i = flat_i.reshape(rows, LANES)   # free reshape, no HBM copy
            main_t = flat_t.reshape(rows, LANES)

        # Dtype-aware block sizing: keep each streamed input block ~4 MiB.
        itemsize = max(inp.dtype.itemsize, tgt.dtype.itemsize)
        max_block_rows = max(
            SUBLANES,
            (TARGET_BLOCK_BYTES // (LANES * itemsize)) // SUBLANES * SUBLANES)
        block_rows = min(max_block_rows, _round_up(rows, SUBLANES))
        steps = pl.cdiv(rows, block_rows)
        need_mask = (rows % block_rows) != 0
        valid_rows_last = rows - (steps - 1) * block_rows

        kernel = functools.partial(
            _quantile_loss_kernel,
            aq=aq, bq=bq, use_max=use_max,
            chunk_rows=CHUNK_ROWS,
            need_mask=need_mask,
            valid_rows_last=valid_rows_last,
        )

        partials = pl.pallas_call(
            kernel,
            out_shape=jax.ShapeDtypeStruct((SUBLANES, LANES), jnp.float32),
            grid_spec=pltpu.PrefetchScalarGridSpec(
                num_scalar_prefetch=0,
                grid=(steps,),
                in_specs=[
                    pl.BlockSpec((block_rows, LANES), lambda s: (s, 0)),
                    pl.BlockSpec((block_rows, LANES), lambda s: (s, 0)),
                ],
                out_specs=pl.BlockSpec((SUBLANES, LANES), lambda s: (0, 0)),
            ),
            compiler_params=pltpu.CompilerParams(
                # TODO(synk): on v7x (2 TCs) a leading CORE_PARALLEL axis with
                # per-core partial sums would shard the HBM stream across both cores.
                dimension_semantics=("arbitrary",),
                vmem_limit_bytes=_vmem_limit_bytes(),
            ),
        )(main_i, main_t)

        # Single tiny cross-lane reduction in the epilogue.
        total = jnp.sum(partials) + tail_sum

    # Note: divisor rounded to f32 (inexact above 2^24 elements, ~1e-7 rel err).
    return (total / jnp.float32(n)).astype(out_dtype)


class QuantileLossPallas:
    """Mirror of the PyTorch QuantileLoss module (q fixed at construction)."""

    def __init__(self, q=0.5):
        assert 0.0 <= q <= 1.0
        self.q = q

    def __call__(self, inp, tgt):
        return quantile_loss_pallas(inp, tgt, q=self.q)


if __name__ == "__main__":
    key = jax.random.PRNGKey(0)
    k1, k2 = jax.random.split(key)

    # NCHW-shaped example inputs (same as the PyTorch module would receive).
    x = jax.random.normal(k1, (2, 4, 16, 16), dtype=jnp.float32)
    y = jax.random.normal(k2, (2, 4, 16, 16), dtype=jnp.float32)

    loss_fn = QuantileLossPallas(q=0.5)
    out = loss_fn(x, y)
    out = jax.block_until_ready(out)

    # Pure-JAX reference check.
    diff = y - x
    ref = jnp.mean(jnp.where(diff >= 0, 0.5 * diff, 0.5 * (-diff)))
    assert jnp.allclose(out, ref, rtol=1e-5, atol=1e-6), (out, ref)

    print("KERNEL_OK")
</pallas_src>

<mosaic_0001>
module attributes {stable_mosaic.version = 11 : i64} {
  func.func @_quantile_loss_kernel(%arg0: i32, %arg1: memref<16x128xf32, #tpu.memory_space<vmem>>, %arg2: memref<16x128xf32, #tpu.memory_space<vmem>>, %arg3: memref<8x128xf32, #tpu.memory_space<vmem>>) attributes {dimension_semantics = [#tpu.dimension_semantics<arbitrary>], iteration_bounds = array<i64: 1>, scalar_prefetch = 0 : i64, scratch_operands = 0 : i64, tpu.core_type = #tpu.core_type<tc>, window_params = [{transform_indices = @transform_0, window_bounds = array<i64: 16, 128>}, {transform_indices = @transform_1, window_bounds = array<i64: 16, 128>}, {pipeline_mode = #tpu.pipeline_mode<synchronous>, transform_indices = @transform_2, window_bounds = array<i64: 8, 128>}]} {
    %c0_i32 = arith.constant 0 : i32
    %0 = arith.cmpi eq, %arg0, %c0_i32 : i32
    %1 = arith.extui %0 : i1 to i32
    %c0_i32_0 = arith.constant 0 : i32
    %2 = arith.cmpi ne, %1, %c0_i32_0 : i32
    scf.if %2 {
      %cst_11 = arith.constant 0.000000e+00 : f32
      %18 = vector.broadcast %cst_11 : f32 to vector<8x128xf32>
      %c0_12 = arith.constant 0 : index
      %c0_13 = arith.constant 0 : index
      %19 = vector.load %arg3[%c0_12, %c0_13] : memref<8x128xf32, #tpu.memory_space<vmem>>, vector<8x128xf32>
      tpu.vector_store %arg3[%c0_12, %c0_13], %18 {strides = array<i32>} : memref<8x128xf32, #tpu.memory_space<vmem>>, vector<8x128xf32>,
    } else {
    }
    %c0 = arith.constant 0 : index
    %c0_1 = arith.constant 0 : index
    %3 = vector.load %arg3[%c0, %c0_1] : memref<8x128xf32, #tpu.memory_space<vmem>>, vector<8x128xf32>
    %cst = arith.constant 0.000000e+00 : f32
    %4 = vector.broadcast %cst : f32 to vector<8x128xf32>
    %c0_2 = arith.constant 0 : index
    %c0_3 = arith.constant 0 : index
    %5 = vector.load %arg2[%c0_2, %c0_3] : memref<16x128xf32, #tpu.memory_space<vmem>>, vector<16x128xf32>
    %c0_4 = arith.constant 0 : index
    %c0_5 = arith.constant 0 : index
    %6 = vector.load %arg1[%c0_4, %c0_5] : memref<16x128xf32, #tpu.memory_space<vmem>>, vector<16x128xf32>
    %7 = arith.subf %5, %6 : vector<16x128xf32>
    %cst_6 = arith.constant 5.000000e-01 : f32
    %8 = vector.broadcast %cst_6 : f32 to vector<16x128xf32>
    %9 = arith.mulf %8, %7 : vector<16x128xf32>
    %cst_7 = arith.constant -5.000000e-01 : f32
    %10 = vector.broadcast %cst_7 : f32 to vector<16x128xf32>
    %11 = arith.mulf %10, %7 : vector<16x128xf32>
    %12 = arith.maximumf %9, %11 : vector<16x128xf32>
    %13 = vector.shape_cast %12 : vector<16x128xf32> to vector<2x8x128xf32>
    %cst_8 = arith.constant dense<0.000000e+00> : vector<8x128xf32>
    %14 = vector.multi_reduction <add>, %13, %cst_8 [0] : vector<2x8x128xf32> to vector<8x128xf32>
    %15 = arith.addf %4, %14 : vector<8x128xf32>
    %16 = arith.addf %3, %15 : vector<8x128xf32>
    %c0_9 = arith.constant 0 : index
    %c0_10 = arith.constant 0 : index
    %17 = vector.load %arg3[%c0_9, %c0_10] : memref<8x128xf32, #tpu.memory_space<vmem>>, vector<8x128xf32>
    tpu.vector_store %arg3[%c0_9, %c0_10], %16 {strides = array<i32>} : memref<8x128xf32, #tpu.memory_space<vmem>>, vector<8x128xf32>,
    return
  }
  func.func @transform_0(%arg0: i32) -> (i32, i32) {
    %c0_i32 = arith.constant 0 : i32
    %c0_i32_0 = arith.constant 0 : i32
    return %arg0, %c0_i32 : i32, i32
  }
  func.func @transform_1(%arg0: i32) -> (i32, i32) {
    %c0_i32 = arith.constant 0 : i32
    %c0_i32_0 = arith.constant 0 : i32
    return %arg0, %c0_i32 : i32, i32
  }
  func.func @transform_2(%arg0: i32) -> (i32, i32) {
    %c0_i32 = arith.constant 0 : i32
    %c0_i32_0 = arith.constant 0 : i32
    %c0_i32_1 = arith.constant 0 : i32
    return %c0_i32, %c0_i32_0 : i32, i32
  }
}

</mosaic_0001>

<llo_original>
// kernel: tpu_custom_call.1
$region0: #{tpu_custom_call.1}
  #allocation0 [shape = 'u32[]', space=smem, size = 0x4, offset = 0x4, fixed_abs, tag = 'smem constant byte address 0x4 - core index']
  #allocation1 [shape = 'u32[144,128]{1,0:T(1,128)}', space=vmem, size = 0x12000, scoped, tag = 'internal scratch']
  %s0 = inlined_call_operand.hbm [shape: f32[16,128], index: 0, kind: input, shape index: {}]
  %s1 = inlined_call_operand.hbm [shape: f32[16,128], index: 1, kind: input, shape index: {}]
  %s2 = inlined_call_operand.hbm [shape: f32[8,128], index: 2, kind: output, shape index: {}]
  %s3 = sld [smem:[#allocation0]]
  $region30: #{tpu_custom_call.1} parent=0
    _
  %s5 = ssub.s32 1, %s3
  %s6 = scalar_select 0, %s5, %s3
  $region1: #{tpu_custom_call.1} parent=0
    #allocation2 [shape = 'u8[8192]{0}', space=vmem, size = 0x2000, scoped, tag = 'input window, operand 0, single buffered']
    #allocation3 [shape = 's32[1]{0}', space=sflag, size = 0x4, scoped, tag = 'scoped memory for tpu_custom_call.1']
    #allocation4 [shape = 's32[1]{0}', space=sflag, size = 0x4, scoped, tag = 'scoped memory for tpu_custom_call.1']
    #allocation5 [shape = 'u8[8192]{0}', space=vmem, size = 0x2000, scoped, tag = 'input window, operand 1, single buffered']
    #allocation6 [shape = 's32[1]{0}', space=sflag, size = 0x4, scoped, tag = 'scoped memory for tpu_custom_call.1']
    #allocation7 [shape = 'u8[4096]{0}', space=vmem, size = 0x1000, scoped, tag = 'output window, operand 0, single buffered']
    %7 = vsyncpa [#allocation3], 0
    %8 = vsyncpa [#allocation6], 0
    %9 = vsyncpa [#allocation4], 0
    // Predicated region
    $region2: #{tpu_custom_call.1} parent=1 // pred_check
      _
    $region3: #{tpu_custom_call.1} parent=1 // pred_check_branch
      %11 = sbr.rel (0) target = $region5
    $region4: #{tpu_custom_call.1} parent=1 // pred_region
      %s13 = ssub.s32 256, 256
      %14 = vsyncadd [#allocation3], %s13
      %s15 = sshll.u32 [#allocation2], 4
      %s16 = int_to_ptr.vmem [resolvable:$true] %s15
      %21 = dma.hbm_to_vmem [thread:$0]  %s0, 256, %s16, [#allocation3], 128, 128, 8
    $region5: #{tpu_custom_call.1} parent=1 // pred_fallthru
      _
    // Predicated region
    $region6: #{tpu_custom_call.1} parent=1 // pred_check
      _
    $region7: #{tpu_custom_call.1} parent=1 // pred_check_branch
      %23 = sbr.rel (0) target = $region9
    $region8: #{tpu_custom_call.1} parent=1 // pred_region
      %s25 = ssub.s32 256, 256
      %26 = vsyncadd [#allocation6], %s25
      %s27 = sshll.u32 [#allocation5], 4
      %s28 = int_to_ptr.vmem [resolvable:$true] %s27
      %33 = dma.hbm_to_vmem [thread:$0]  %s1, 256, %s28, [#allocation6], 128, 128, 8
    $region9: #{tpu_custom_call.1} parent=1 // pred_fallthru
      _
    // Predicated region
    $region10: #{tpu_custom_call.1} parent=1 // pred_check
      _
    $region11: #{tpu_custom_call.1} parent=1 // pred_check_branch
      %35 = sbr.rel (0) target = $region13
    $region12: #{tpu_custom_call.1} parent=1 // pred_region
      %36 = dma.done [#allocation3], 256
    $region13: #{tpu_custom_call.1} parent=1 // pred_fallthru
      _
    // Predicated region
    $region14: #{tpu_custom_call.1} parent=1 // pred_check
      _
    $region15: #{tpu_custom_call.1} parent=1 // pred_check_branch
      %38 = sbr.rel (0) target = $region17
    $region16: #{tpu_custom_call.1} parent=1 // pred_region
      %39 = dma.done [#allocation6], 256
    $region17: #{tpu_custom_call.1} parent=1 // pred_fallthru
      _
    %p40 = scmp.eq.s32.totalorder 0, 0
    // Predicated region
    $region18: #{tpu_custom_call.1} parent=1 // pred_check
      %p41 = pneg %p40
    $region19: #{tpu_custom_call.1} parent=1 // pred_check_branch
      %43 = sbr.rel (%p41) target = $region21
    $region20: #{tpu_custom_call.1} parent=1 // pred_region
      %44 = vst [vmem:[#allocation7] sm:$0xff] 0.0
    $region21: #{tpu_custom_call.1} parent=1 // pred_fallthru
      _
    %v45 = vld [vmem:[#allocation7] sm:$0xff]
    %v46 = vld [vmem:[#allocation5] sm:$0xff]
    %v47 = vld [vmem:[#allocation5 + $0x8] sm:$0xff]
    %v48 = vld [vmem:[#allocation2] sm:$0xff]
    %v49 = vld [vmem:[#allocation2 + $0x8] sm:$0xff]
    %v50 = vsub.f32 %v46, %v48
    %v51 = vsub.f32 %v47, %v49
    %v52 = vmul.f32 %v50, 0.5
    %v53 = vmul.f32 %v51, 0.5
    %v54 = vmul.f32 %v50, -0.5
    %v55 = vmul.f32 %v51, -0.5
    %v56 = vmax.f32 %v52, %v54
    %v57 = vmax.f32 %v53, %v55
    %v58 = vadd.f32 %v56, %v57
    %v59 = vadd.f32 %v58, 0.0
    %v60 = vadd.f32 %v45, %v59
    %61 = vst [vmem:[#allocation7] sm:$0xff] %v60
    // Predicated region
    $region22: #{tpu_custom_call.1} parent=1 // pred_check
      _
    $region23: #{tpu_custom_call.1} parent=1 // pred_check_branch
      %63 = sbr.rel (0) target = $region25
    $region24: #{tpu_custom_call.1} parent=1 // pred_region
      %s65 = ssub.s32 128, 128
      %66 = vsyncadd [#allocation4], %s65
      %s68 = sshll.u32 [#allocation7], 4
      %s69 = int_to_ptr.vmem [resolvable:$true] %s68
      %71 = dma.vmem_to_hbm [thread:$0]  %s69, 128, %s2, [#allocation4]
    $region25: #{tpu_custom_call.1} parent=1 // pred_fallthru
      _
    // Predicated region
    $region26: #{tpu_custom_call.1} parent=1 // pred_check
      _
    $region27: #{tpu_custom_call.1} parent=1 // pred_check_branch
      %73 = sbr.rel (0) target = $region29
    $region28: #{tpu_custom_call.1} parent=1 // pred_region
      %74 = dma.done [#allocation4], 128
    $region29: #{tpu_custom_call.1} parent=1 // pred_fallthru
      _
    %75 = vsyncpa [#allocation3], 1
    %76 = vsyncpa [#allocation6], 1
    %77 = vsyncpa [#allocation4], 1

</llo_original>
